<compile_context>
chip_gen: v6e
topology: v6e:2x2x1
jax: 0.10.0
libtpu: 0.0.40
codegen_flags: <defaults>
</compile_context>

<pallas_src>
import functools

import jax
import jax.numpy as jnp
from jax.experimental import pallas as pl
from jax.experimental.pallas import tpu as pltpu

EPS = 1e-5
LANES = 128


def multiclass_net_kernel(x_ref, p_ref, o_ref):
    B = x_ref.shape[0]                      # static
    F = x_ref.shape[1]                      # static
    # Packed slab rows: [w1 (F rows), gamma, beta, w2_row, b2_broadcast]
    w1 = p_ref[0:F, :]                      # (F, H)
    gamma = p_ref[F:F + 1, :]               # (1, H)
    beta = p_ref[F + 1:F + 2, :]            # (1, H)
    w2_row = p_ref[F + 2:F + 3, :]          # (1, H)  second linear, lane-dense
    b2 = p_ref[F + 3:F + 4, 0:1]            # (1, 1)

    # --- linear1: (B, F) @ (F, H)  (MXU, f32 accumulate).  No bias add: it is
    #     mathematically cancelled by training-mode BN's mean subtraction. ---
    h = jnp.dot(x_ref[...], w1, preferred_element_type=jnp.float32)

    # --- BatchNorm1d (training: batch mean, biased variance), two-pass form ---
    inv_b = 1.0 / B
    mean = jnp.sum(h, axis=0, keepdims=True) * inv_b          # (1, H)
    centered = h - mean                                        # (B, H)
    var = jnp.sum(centered * centered, axis=0, keepdims=True) * inv_b
    scale = gamma * jax.lax.rsqrt(var + EPS)                   # 0 in padded lanes

    # --- BN affine + ReLU in one mul/add/max pass over the (B, H) tile ---
    h = jnp.maximum(centered * scale + beta, 0.0)

    # --- linear2 (out_features=1) as VPU multiply + XLU lane reduce ---
    z = jnp.sum(h * w2_row, axis=-1, keepdims=True) + b2       # (B, 1)

    # --- Sigmoid (EUP) ---
    o_ref[...] = jax.nn.sigmoid(z)


def pack_params(w1, b1, gamma, beta, w2, b2):
    """One-time packing of all weights into a single lane-dense (F+4, H_pad) slab.

    b1 is intentionally discarded: training-mode BatchNorm1d subtracts the batch
    mean, which cancels any per-column bias added before it.  Zero padding keeps
    padded lanes inert (gamma=0 -> scale=0, beta=0, w2 row=0).
    """
    del b1  # cancelled by BN mean subtraction (training mode)
    F, H = w1.shape
    H_pad = ((H + LANES - 1) // LANES) * LANES
    pad = H_pad - H
    if pad:
        w1 = jnp.pad(w1, ((0, 0), (0, pad)))
        gamma = jnp.pad(gamma, ((0, 0), (0, pad)))
        beta = jnp.pad(beta, ((0, 0), (0, pad)))
        w2 = jnp.pad(w2, ((0, pad), (0, 0)))
    w2_row = w2.T                                   # (1, H_pad)
    b2_row = jnp.broadcast_to(b2, (1, H_pad))       # scalar bias as a full row
    return jnp.concatenate([w1, gamma, beta, w2_row, b2_row], axis=0)


@jax.jit
def multiclass_net_forward(x, packed):
    """x: (B, F) f32; packed: (F+4, H_pad) f32 slab from pack_params()."""
    B, F = x.shape
    H_pad = packed.shape[1]
    vmem = pl.BlockSpec(memory_space=pltpu.MemorySpace.VMEM)
    cost = pl.CostEstimate(
        flops=2 * B * F * H_pad + 8 * B * H_pad,
        transcendentals=H_pad + B,
        bytes_accessed=x.size * 4 + packed.size * 4 + B * 4,
    )
    return pl.pallas_call(
        multiclass_net_kernel,
        out_shape=jax.ShapeDtypeStruct((B, 1), jnp.float32),
        in_specs=[vmem, vmem],      # x, packed slab -> 2 input DMAs
        out_specs=vmem,
        cost_estimate=cost,
    )(x, packed)


def init_params(key, features, hidden_features):
    """Deterministic init mimicking nn.Linear defaults (U(-1/sqrt(fan_in), +))."""
    k1, k2, k3, k4 = jax.random.split(key, 4)
    bound1 = 1.0 / jnp.sqrt(features)
    w1 = jax.random.uniform(k1, (features, hidden_features), jnp.float32,
                            -bound1, bound1)
    b1 = jax.random.uniform(k2, (1, hidden_features), jnp.float32,
                            -bound1, bound1)
    bound2 = 1.0 / jnp.sqrt(hidden_features)
    w2 = jax.random.uniform(k3, (hidden_features, 1), jnp.float32,
                            -bound2, bound2)
    b2 = jax.random.uniform(k4, (1, 1), jnp.float32, -bound2, bound2)
    # BatchNorm1d affine params: gamma=1, beta=0 (PyTorch default init)
    gamma = jnp.ones((1, hidden_features), jnp.float32)
    beta = jnp.zeros((1, hidden_features), jnp.float32)
    return w1, b1, gamma, beta, w2, b2


def reference_forward(x, w1, b1, gamma, beta, w2, b2):
    """Pure-JAX reference matching PyTorch training-mode BatchNorm1d."""
    h = x @ w1 + b1
    mean = jnp.mean(h, axis=0, keepdims=True)
    var = jnp.mean((h - mean) ** 2, axis=0, keepdims=True)
    h = (h - mean) / jnp.sqrt(var + EPS) * gamma + beta
    h = jnp.maximum(h, 0.0)
    logits = h @ w2 + b2
    return jax.nn.sigmoid(logits), logits


if __name__ == "__main__":
    batch = 8
    features = 16
    hidden_features = 100

    key = jax.random.PRNGKey(0)
    kx, kp = jax.random.split(key)
    x = jax.random.normal(kx, (batch, features), jnp.float32)
    params = init_params(kp, features, hidden_features)

    # One-time parameter packing (out of the hot forward path).
    packed = jax.block_until_ready(pack_params(*params))

    out = multiclass_net_forward(x, packed)
    out = jax.block_until_ready(out)

    ref, ref_logits = reference_forward(x, *params)
    assert out.shape == (batch, 1), out.shape
    # Post-sigmoid check (matches PyTorch forward output).
    assert jnp.allclose(out, ref, atol=1e-5, rtol=1e-5), (out, ref)
    # Pre-sigmoid (logit-space) check so the sigmoid doesn't mask errors.
    out_logits = jnp.log(out) - jnp.log1p(-out)
    assert jnp.allclose(out_logits, ref_logits, atol=1e-4, rtol=1e-4), (
        out_logits, ref_logits)

    print("KERNEL_OK")
</pallas_src>

<mosaic_0001>
module attributes {stable_mosaic.version = 11 : i64} {
  func.func @multiclass_net_kernel(%arg0: memref<8x16xf32, #tpu.memory_space<vmem>>, %arg1: memref<20x128xf32, #tpu.memory_space<vmem>>, %arg2: memref<8x1xf32, #tpu.memory_space<vmem>>) attributes {dimension_semantics = [], scalar_prefetch = 0 : i64, scratch_operands = 0 : i64, tpu.core_type = #tpu.core_type<tc>} {
    %c0 = arith.constant 0 : index
    %c0_0 = arith.constant 0 : index
    %0 = vector.load %arg1[%c0, %c0_0] : memref<20x128xf32, #tpu.memory_space<vmem>>, vector<16x128xf32>
    %c16 = arith.constant 16 : index
    %c0_1 = arith.constant 0 : index
    %1 = vector.load %arg1[%c16, %c0_1] : memref<20x128xf32, #tpu.memory_space<vmem>>, vector<1x128xf32>
    %c17 = arith.constant 17 : index
    %c0_2 = arith.constant 0 : index
    %2 = vector.load %arg1[%c17, %c0_2] : memref<20x128xf32, #tpu.memory_space<vmem>>, vector<1x128xf32>
    %c18 = arith.constant 18 : index
    %c0_3 = arith.constant 0 : index
    %3 = vector.load %arg1[%c18, %c0_3] : memref<20x128xf32, #tpu.memory_space<vmem>>, vector<1x128xf32>
    %c19 = arith.constant 19 : index
    %c0_4 = arith.constant 0 : index
    %4 = vector.load %arg1[%c19, %c0_4] : memref<20x128xf32, #tpu.memory_space<vmem>>, vector<1x1xf32>
    %c0_5 = arith.constant 0 : index
    %c0_6 = arith.constant 0 : index
    %5 = vector.load %arg0[%c0_5, %c0_6] : memref<8x16xf32, #tpu.memory_space<vmem>>, vector<8x16xf32>
    %cst = arith.constant dense<0.000000e+00> : vector<8x128xf32>
    %6 = tpu.matmul %5, %0, %cst {dimension_numbers = #tpu.dot_dimension_numbers<[1], [0], [0], [1], [0, 0, 1, 1], [], []>} : vector<8x16xf32>, vector<16x128xf32>, vector<8x128xf32> -> vector<8x128xf32>
    %cst_7 = arith.constant dense<0.000000e+00> : vector<128xf32>
    %7 = vector.multi_reduction <add>, %6, %cst_7 [0] : vector<8x128xf32> to vector<128xf32>
    %8 = vector.shape_cast %7 : vector<128xf32> to vector<1x128xf32>
    %cst_8 = arith.constant 1.250000e-01 : f32
    %9 = vector.broadcast %cst_8 : f32 to vector<1x128xf32>
    %10 = arith.mulf %8, %9 : vector<1x128xf32>
    %11 = vector.broadcast %10 : vector<1x128xf32> to vector<8x128xf32>
    %12 = arith.subf %6, %11 : vector<8x128xf32>
    %13 = arith.mulf %12, %12 : vector<8x128xf32>
    %cst_9 = arith.constant dense<0.000000e+00> : vector<128xf32>
    %14 = vector.multi_reduction <add>, %13, %cst_9 [0] : vector<8x128xf32> to vector<128xf32>
    %15 = vector.shape_cast %14 : vector<128xf32> to vector<1x128xf32>
    %cst_10 = arith.constant 1.250000e-01 : f32
    %16 = vector.broadcast %cst_10 : f32 to vector<1x128xf32>
    %17 = arith.mulf %15, %16 : vector<1x128xf32>
    %cst_11 = arith.constant 9.99999974E-6 : f32
    %18 = vector.broadcast %cst_11 : f32 to vector<1x128xf32>
    %19 = arith.addf %17, %18 : vector<1x128xf32>
    %20 = math.rsqrt %19 : vector<1x128xf32>
    %21 = arith.mulf %1, %20 : vector<1x128xf32>
    %22 = vector.broadcast %21 : vector<1x128xf32> to vector<8x128xf32>
    %23 = arith.mulf %12, %22 : vector<8x128xf32>
    %24 = vector.broadcast %2 : vector<1x128xf32> to vector<8x128xf32>
    %25 = arith.addf %23, %24 : vector<8x128xf32>
    %cst_12 = arith.constant 0.000000e+00 : f32
    %26 = vector.broadcast %cst_12 : f32 to vector<8x128xf32>
    %27 = arith.maximumf %25, %26 : vector<8x128xf32>
    %28 = vector.broadcast %3 : vector<1x128xf32> to vector<8x128xf32>
    %29 = arith.mulf %27, %28 : vector<8x128xf32>
    %cst_13 = arith.constant dense<0.000000e+00> : vector<8xf32>
    %30 = vector.multi_reduction <add>, %29, %cst_13 [1] : vector<8x128xf32> to vector<8xf32>
    %31 = vector.shape_cast %30 : vector<8xf32> to vector<8x1xf32>
    %32 = vector.broadcast %4 : vector<1x1xf32> to vector<8x1xf32>
    %33 = arith.addf %31, %32 : vector<8x1xf32>
    %34 = arith.negf %33 : vector<8x1xf32>
    %35 = math.exp %34 : vector<8x1xf32>
    %cst_14 = arith.constant 1.000000e+00 : f32
    %36 = vector.broadcast %cst_14 : f32 to vector<8x1xf32>
    %37 = arith.addf %36, %35 : vector<8x1xf32>
    %38 = arith.divf %36, %37 : vector<8x1xf32>
    %c0_15 = arith.constant 0 : index
    %c0_16 = arith.constant 0 : index
    %39 = vector.load %arg2[%c0_15, %c0_16] : memref<8x1xf32, #tpu.memory_space<vmem>>, vector<8x1xf32>
    tpu.vector_store %arg2[%c0_15, %c0_16], %38 {strides = array<i32>} : memref<8x1xf32, #tpu.memory_space<vmem>>, vector<8x1xf32>,
    return
  }
}

</mosaic_0001>

<llo_original>
// kernel: multiclass_net_forward.1
$region0: #{multiclass_net_forward.1}
  #allocation0 [shape = 'u32[]', space=smem, size = 0x4, offset = 0x4, fixed_abs, tag = 'smem constant byte address 0x4 - core index']
  #allocation1 [shape = 'u32[144,128]{1,0:T(1,128)}', space=vmem, size = 0x12000, scoped, tag = 'internal scratch']
  %s0 = inlined_call_operand.hbm [shape: f32[8,16], index: 0, kind: input, shape index: {}]
  %s1 = inlined_call_operand.hbm [shape: f32[20,128], index: 1, kind: input, shape index: {}]
  %s2 = inlined_call_operand.vmem [shape: f32[8,1], index: 2, kind: output, shape index: {}]
  %s3 = sld [smem:[#allocation0]]
  $region26: #{multiclass_net_forward.1} parent=0
    _
  %s5 = ssub.s32 1, %s3
  %s6 = scalar_select 0, %s5, %s3
  $region1: #{multiclass_net_forward.1} parent=0
    #allocation2 [shape = 'u8[4096]{0}', space=vmem, size = 0x1000, scoped, tag = 'input window, operand 0, single buffered']
    #allocation3 [shape = 's32[1]{0}', space=sflag, size = 0x4, scoped, tag = 'scoped memory for multiclass_net_forward.1']
    #allocation4 [shape = 'u8[12288]{0}', space=vmem, size = 0x3000, scoped, tag = 'input window, operand 1, single buffered']
    #allocation5 [shape = 's32[1]{0}', space=sflag, size = 0x4, scoped, tag = 'scoped memory for multiclass_net_forward.1']
    %7 = vsyncpa [#allocation3], 0
    %8 = vsyncpa [#allocation5], 0
    // Predicated region
    $region2: #{multiclass_net_forward.1} parent=1 // pred_check
      _
    $region3: #{multiclass_net_forward.1} parent=1 // pred_check_branch
      %10 = sbr.rel (0) target = $region5
    $region4: #{multiclass_net_forward.1} parent=1 // pred_region
      %s12 = ssub.s32 128, 128
      %13 = vsyncadd [#allocation3], %s12
      %s15 = sshll.u32 [#allocation2], 4
      %s16 = int_to_ptr.vmem [resolvable:$true] %s15
      %18 = dma.hbm_to_vmem [thread:$0]  %s0, 128, %s16, [#allocation3]
    $region5: #{multiclass_net_forward.1} parent=1 // pred_fallthru
      _
    // Predicated region
    $region6: #{multiclass_net_forward.1} parent=1 // pred_check
      _
    $region7: #{multiclass_net_forward.1} parent=1 // pred_check_branch
      %20 = sbr.rel (0) target = $region9
    $region8: #{multiclass_net_forward.1} parent=1 // pred_region
      %s22 = ssub.s32 384, 384
      %23 = vsyncadd [#allocation5], %s22
      %s24 = sshll.u32 [#allocation4], 4
      %s25 = int_to_ptr.vmem [resolvable:$true] %s24
      %30 = dma.hbm_to_vmem [thread:$0]  %s1, 384, %s25, [#allocation5], 128, 128, 8
    $region9: #{multiclass_net_forward.1} parent=1 // pred_fallthru
      _
    // Predicated region
    $region10: #{multiclass_net_forward.1} parent=1 // pred_check
      _
    $region11: #{multiclass_net_forward.1} parent=1 // pred_check_branch
      %32 = sbr.rel (0) target = $region13
    $region12: #{multiclass_net_forward.1} parent=1 // pred_region
      %33 = dma.done [#allocation3], 128
    $region13: #{multiclass_net_forward.1} parent=1 // pred_fallthru
      _
    // Predicated region
    $region14: #{multiclass_net_forward.1} parent=1 // pred_check
      _
    $region15: #{multiclass_net_forward.1} parent=1 // pred_check_branch
      %35 = sbr.rel (0) target = $region17
    $region16: #{multiclass_net_forward.1} parent=1 // pred_region
      %36 = dma.done [#allocation5], 384
    $region17: #{multiclass_net_forward.1} parent=1 // pred_fallthru
      _
    %v37 = vld [vmem:[#allocation4] sm:$0xff]
    %v38 = vld [vmem:[#allocation4 + $0x8] sm:$0xff]
    %v39 = vld [vmem:[#allocation4 + $0x10] sm:$0x1]
    %v40 = vld [vmem:[#allocation4 + $0x11] sm:$0x1]
    %v41 = vld [vmem:[#allocation4 + $0x12] sm:$0x1]
    %v42 = vld [vmem:[#allocation4 + $0x13] sm:$0x1]
    %v43 = vld [vmem:[#allocation2] sm:$0xff]
    %vm44 = vcmask 130048
    %v46 = vsel %vm44, %v43, 0
    %48 = vmatprep.subr.mxu0 0.0
    %49 = vmatpush1.msra.mxu0 0.0
    %50 = vmatprep.subr.mxu0 0.0
    %51 = vmatpush1.msra.mxu0 0.0
    %52 = vmatprep.subr.mxu0 0.0
    %53 = vmatpush1.msra.mxu0 0.0
    %54 = vmatprep.subr.mxu0 0.0
    %55 = vmatpush1.msra.mxu0 0.0
    %56 = vmatprep.subr.mxu0 0.0
    %57 = vmatpush1.msra.mxu0 0.0
    %58 = vmatprep.subr.mxu0 0.0
    %59 = vmatpush1.msra.mxu0 0.0
    %60 = vmatprep.subr.mxu0 0.0
    %61 = vmatpush1.msra.mxu0 0.0
    %62 = vmatprep.subr.mxu0 0.0
    %63 = vmatpush1.msra.mxu0 0.0
    %64 = vmatprep.subr.mxu0 0.0
    %65 = vmatpush1.msra.mxu0 0.0
    %66 = vmatprep.subr.mxu0 0.0
    %67 = vmatpush1.msra.mxu0 0.0
    %68 = vmatprep.subr.mxu0 0.0
    %69 = vmatpush1.msra.mxu0 0.0
    %70 = vmatprep.subr.mxu0 0.0
    %71 = vmatpush1.msra.mxu0 0.0
    %72 = vmatprep.subr.mxu0 0.0
    %73 = vmatpush1.msra.mxu0 0.0
    %74 = vmatprep.subr.mxu0 0.0
    %75 = vmatpush1.msra.mxu0 0.0
    %76 = vmatprep.subr.mxu0 0.0
    %77 = vmatpush1.msra.mxu0 %v38
    %78 = vmatprep.subr.mxu0 0.0
    %79 = vmatpush1.msra.mxu0 %v37
    %80 = vmatprep.subr.mxu0 0.0
    %81 = vmatpush2.msra.mxu0 0.0
    %82 = vmatprep.subr.mxu0 0.0
    %83 = vmatpush2.msra.mxu0 0.0
    %84 = vmatprep.subr.mxu0 0.0
    %85 = vmatpush2.msra.mxu0 0.0
    %86 = vmatprep.subr.mxu0 0.0
    %87 = vmatpush2.msra.mxu0 0.0
    %88 = vmatprep.subr.mxu0 0.0
    %89 = vmatpush2.msra.mxu0 0.0
    %90 = vmatprep.subr.mxu0 0.0
    %91 = vmatpush2.msra.mxu0 0.0
    %92 = vmatprep.subr.mxu0 0.0
    %93 = vmatpush2.msra.mxu0 0.0
    %94 = vmatprep.subr.mxu0 0.0
    %95 = vmatpush2.msra.mxu0 0.0
    %96 = vmatprep.subr.mxu0 0.0
    %97 = vmatpush2.msra.mxu0 0.0
    %98 = vmatprep.subr.mxu0 0.0
    %99 = vmatpush2.msra.mxu0 0.0
    %100 = vmatprep.subr.mxu0 0.0
    %101 = vmatpush2.msra.mxu0 0.0
    %102 = vmatprep.subr.mxu0 0.0
    %103 = vmatpush2.msra.mxu0 0.0
    %104 = vmatprep.subr.mxu0 0.0
    %105 = vmatpush2.msra.mxu0 0.0
    %106 = vmatprep.subr.mxu0 0.0
    %107 = vmatpush2.msra.mxu0 0.0
    %108 = vmatprep.subr.mxu0 0.0
    %109 = vmatpush2.msra.mxu0 0.0
    %110 = vmatprep.subr.mxu0 0.0
    %111 = vmatpush2.msra.mxu0 0.0
    %112 = vmatprep.mubr.f32.mxu0 0.0
    %113 = vmatmul.mubr.f32.gmra.mxu0 %v46
    %v114 = vpop.f32.mrf.mxu0
    %v115 = vadd.f32 0.0, %v114
    %v116 = vpop.f32.mrf.mxu0
    %117 = vdwg.mxu0
    %v118 = vrot.slane %v115, 4
    %v119 = vadd.f32 %v115, %v118
    %v120 = vrot.slane %v119, 2
    %v121 = vadd.f32 %v119, %v120
    %v122 = vrot.slane %v121, 1
    %v123 = vadd.f32 %v121, %v122
    %v124 = vmul.f32 %v123, 0.125
    %v125 = vsub.f32 %v115, %v124
    %v126 = vmul.f32 %v125, %v125
    %v127 = vrot.slane %v126, 4
    %v128 = vadd.f32 %v126, %v127
    %v129 = vrot.slane %v128, 2
    %v130 = vadd.f32 %v128, %v129
    %v131 = vrot.slane %v130, 1
    %v132 = vadd.f32 %v130, %v131
    %v133 = vmul.f32 %v132, 0.125
    %v134 = vadd.f32 %v133, 1e-05
    %v135 = vrsqrt.pop %v134
    %v136 = vmul.f32 %v39, %v135
    %v137 = vlaneseq
    %v138 = vshrl.u32 %v137, 7
    %v139 = vsub.s32 0, %v138
    %v140 = vrot.slane %v136, %v139
    %v141 = vmul.f32 %v125, %v140
    %v142 = vlaneseq
    %v143 = vshrl.u32 %v142, 7
    %v144 = vsub.s32 0, %v143
    %v145 = vrot.slane %v40, %v144
    %v146 = vadd.f32 %v141, %v145
    %v147 = vmax.f32 %v146, 0.0
    %v148 = vlaneseq
    %v149 = vshrl.u32 %v148, 7
    %v150 = vsub.s32 0, %v149
    %v151 = vrot.slane %v41, %v150
    %v152 = vmul.f32 %v147, %v151
    %153 = vadd.xlane.f32.xlu0 %v152
    %v154 = vpop.xlane.xlu0 %153
    %v155 = vlaneseq
    %v156 = vshrl.u32 %v155, 7
    %v157 = vsub.s32 0, %v156
    %v158 = vrot.slane %v42, %v157
    %v159 = vadd.f32 %v154, %v158
    %v160 = vxor.u32 %v159, 2147483648
    %v161 = vmul.f32 %v160, 1.442695
    %v162 = vpow.pop %v161
    %v163 = vadd.f32 %v162, 1.0
    %v164 = vrcp.pop %v163
    %v165 = vmul.f32 1.0, %v164
    %vm166 = vcmask 7168
    %167 = vst.msk [vmem:[%s2] sm:$0xff] %vm166, %v165
    // Predicated region
    $region18: #{multiclass_net_forward.1} parent=1 // pred_check
      _
    $region19: #{multiclass_net_forward.1} parent=1 // pred_check_branch
      %169 = sbr.rel (0) target = $region21
    $region20: #{multiclass_net_forward.1} parent=1 // pred_region
      _
    $region21: #{multiclass_net_forward.1} parent=1 // pred_fallthru
      _
    // Predicated region
    $region22: #{multiclass_net_forward.1} parent=1 // pred_check
      _
    $region23: #{multiclass_net_forward.1} parent=1 // pred_check_branch
      %171 = sbr.rel (0) target = $region25
    $region24: #{multiclass_net_forward.1} parent=1 // pred_region
      _
    $region25: #{multiclass_net_forward.1} parent=1 // pred_fallthru
      _
    %172 = vsyncpa [#allocation3], 1
    %173 = vsyncpa [#allocation5], 1

</llo_original>
